<compile_context>
chip_gen: v7x
topology: tpu7x:2x2x1
jax: 0.10.0
libtpu: 0.0.40
codegen_flags: <defaults>
</compile_context>

<pallas_src>
import jax
import jax.numpy as jnp
from jax.experimental import pallas as pl
from jax.experimental.pallas import tpu as pltpu


def _exp_kernel(x_ref, o_ref):
    # Elementwise exp on the whole VMEM tile (EUP transcendental, VPU-free).
    o_ref[...] = jnp.exp(x_ref[...])


# Sublane packing by itemsize (f32 -> 8, bf16/f16 -> 16, int8/fp8 -> 32).
_SUBLANE = {4: 8, 2: 16, 1: 32}

# ~2 MiB per input tile: with input+output double-buffered that is ~8 MiB of
# VMEM, well under the scoped default on all targets (16 MiB v5e, 32 MiB
# v6e/v7x), while on the 85%+ HBM-roofline plateau measured for 2-4 MiB tiles.
_TARGET_TILE_BYTES = 2 * 1024 * 1024

# Candidate lane widths, widest first (lane-dense output is the biggest lever).
_LANE_WIDTHS = (2048, 1024, 512, 256, 128)


def _exp_2d(x2d: jax.Array) -> jax.Array:
    """Run the exp kernel over a lane-dense (rows, W) slab; W a multiple of 128."""
    rows, W = x2d.shape
    itemsize = jnp.dtype(x2d.dtype).itemsize
    sub = _SUBLANE.get(itemsize, 8)

    # Row tile: target ~_TARGET_TILE_BYTES, rounded down to the sublane packing.
    tr = max(sub, (_TARGET_TILE_BYTES // (W * itemsize)) // sub * sub)
    tr = min(tr, rows)
    grid = (pl.cdiv(rows, tr),)

    n_elems = rows * W
    cost = pl.CostEstimate(
        flops=0,
        transcendentals=n_elems,
        bytes_accessed=2 * n_elems * itemsize,
    )

    return pl.pallas_call(
        _exp_kernel,
        out_shape=jax.ShapeDtypeStruct((rows, W), x2d.dtype),
        grid_spec=pltpu.PrefetchScalarGridSpec(
            num_scalar_prefetch=0,
            grid=grid,
            in_specs=[pl.BlockSpec((tr, W), lambda i: (i, 0))],
            out_specs=pl.BlockSpec((tr, W), lambda i: (i, 0)),
        ),
        compiler_params=pltpu.CompilerParams(
            dimension_semantics=("parallel",),
        ),
        cost_estimate=cost,
    )(x2d)


def exp_activation(x: jax.Array) -> jax.Array:
    """Computes jnp.exp(x) with a Pallas TPU kernel. Works for any shape/float dtype."""
    orig_shape = x.shape
    n = x.size
    if n == 0:
        return x

    itemsize = jnp.dtype(x.dtype).itemsize
    sub = _SUBLANE.get(itemsize, 8)

    x_flat = x.reshape(-1)

    # Fast path: widest lane width W (multiple of 128) such that the whole flat
    # array is a whole number of (sub, W) vreg-aligned rows -> zero padding,
    # zero extra passes, zero copies in the wrapper.
    for cand in _LANE_WIDTHS:
        if n % (sub * cand) == 0:
            out2d = _exp_2d(x_flat.reshape(n // cand, cand))
            return out2d.reshape(orig_shape)

    # Unaligned size: run the kernel on the aligned bulk at the widest W that
    # still leaves a non-empty bulk, compute the small tail with plain jnp.exp.
    for cand in _LANE_WIDTHS:
        unit = sub * cand
        bulk_n = (n // unit) * unit
        if bulk_n > 0:
            out_bulk = _exp_2d(x_flat[:bulk_n].reshape(bulk_n // cand, cand)).reshape(-1)
            out_tail = jnp.exp(x_flat[bulk_n:])
            return jnp.concatenate([out_bulk, out_tail]).reshape(orig_shape)

    # Sub-vreg-sized input: a kernel launch is pure overhead.
    return jnp.exp(x)


if __name__ == "__main__":
    key = jax.random.PRNGKey(0)

    # NCHW input matching the module's elementwise forward: batch=2, channels=4, 16x16.
    x = jax.random.normal(key, (2, 4, 16, 16), dtype=jnp.float32)
    y = jax.block_until_ready(exp_activation(x))
    y_ref = jnp.exp(x)
    assert y.shape == x.shape and y.dtype == x.dtype
    assert jnp.allclose(y, y_ref, rtol=1e-6, atol=1e-6)

    # Also exercise the unaligned (bulk + tail) path with an odd-sized input.
    x2 = jax.random.normal(jax.random.PRNGKey(1), (4, 300), dtype=jnp.float32)
    y2 = jax.block_until_ready(exp_activation(x2))
    assert jnp.allclose(y2, jnp.exp(x2), rtol=1e-6, atol=1e-6)

    print("KERNEL_OK")
</pallas_src>

<mosaic_0001>
module attributes {stable_mosaic.version = 11 : i64} {
  func.func @_exp_kernel(%arg0: i32, %arg1: memref<8x256xf32, #tpu.memory_space<vmem>>, %arg2: memref<8x256xf32, #tpu.memory_space<vmem>>) attributes {dimension_semantics = [#tpu.dimension_semantics<parallel>], iteration_bounds = array<i64: 1>, scalar_prefetch = 0 : i64, scratch_operands = 0 : i64, tpu.core_type = #tpu.core_type<tc>, window_params = [{transform_indices = @transform_0, window_bounds = array<i64: 8, 256>}, {transform_indices = @transform_1, window_bounds = array<i64: 8, 256>}]} {
    %c0 = arith.constant 0 : index
    %c0_0 = arith.constant 0 : index
    %0 = vector.load %arg1[%c0, %c0_0] : memref<8x256xf32, #tpu.memory_space<vmem>>, vector<8x256xf32>
    %1 = math.exp %0 : vector<8x256xf32>
    %c0_1 = arith.constant 0 : index
    %c0_2 = arith.constant 0 : index
    %2 = vector.load %arg2[%c0_1, %c0_2] : memref<8x256xf32, #tpu.memory_space<vmem>>, vector<8x256xf32>
    tpu.vector_store %arg2[%c0_1, %c0_2], %1 {strides = array<i32>} : memref<8x256xf32, #tpu.memory_space<vmem>>, vector<8x256xf32>,
    return
  }
  func.func @transform_0(%arg0: i32) -> (i32, i32) {
    %c0_i32 = arith.constant 0 : i32
    %c0_i32_0 = arith.constant 0 : i32
    return %arg0, %c0_i32 : i32, i32
  }
  func.func @transform_1(%arg0: i32) -> (i32, i32) {
    %c0_i32 = arith.constant 0 : i32
    %c0_i32_0 = arith.constant 0 : i32
    return %arg0, %c0_i32 : i32, i32
  }
}

</mosaic_0001>

<llo_original>
// kernel: tpu_custom_call.1
$region0: #{tpu_custom_call.1}
  #allocation0 [shape = 'u32[]', space=smem, size = 0x4, offset = 0x4, fixed_abs, tag = 'smem constant byte address 0x4 - core index']
  #allocation1 [shape = 'u32[144,128]{1,0:T(1,128)}', space=vmem, size = 0x12000, scoped, tag = 'internal scratch']
  %s0 = inlined_call_operand.hbm [shape: f32[8,256], index: 0, kind: input, shape index: {}]
  %s1 = inlined_call_operand.hbm [shape: f32[8,256], index: 1, kind: output, shape index: {}]
  %s2 = sld [smem:[#allocation0]]
  $region18: #{tpu_custom_call.1} parent=0
    _
  %s4 = ssub.s32 1, %s2
  %s5 = scalar_select 0, %s4, %s2
  $region1: #{tpu_custom_call.1} parent=0
    #allocation2 [shape = 'u8[8192]{0}', space=vmem, size = 0x2000, scoped, tag = 'input window, operand 0, single buffered']
    #allocation3 [shape = 's32[1]{0}', space=sflag, size = 0x4, scoped, tag = 'scoped memory for tpu_custom_call.1']
    #allocation4 [shape = 's32[1]{0}', space=sflag, size = 0x4, scoped, tag = 'scoped memory for tpu_custom_call.1']
    #allocation5 [shape = 'u8[8192]{0}', space=vmem, size = 0x2000, scoped, tag = 'output window, operand 0, single buffered']
    %6 = vsyncpa [#allocation3], 0
    %7 = vsyncpa [#allocation4], 0
    // Predicated region
    $region2: #{tpu_custom_call.1} parent=1 // pred_check
      _
    $region3: #{tpu_custom_call.1} parent=1 // pred_check_branch
      %9 = sbr.rel (0) target = $region5
    $region4: #{tpu_custom_call.1} parent=1 // pred_region
      %s11 = ssub.s32 256, 256
      %12 = vsyncadd [#allocation3], %s11
      %s14 = sshll.u32 [#allocation2], 4
      %s15 = int_to_ptr.vmem [resolvable:$true] %s14
      %17 = dma.hbm_to_vmem [thread:$0]  %s0, 256, %s15, [#allocation3]
    $region5: #{tpu_custom_call.1} parent=1 // pred_fallthru
      _
    // Predicated region
    $region6: #{tpu_custom_call.1} parent=1 // pred_check
      _
    $region7: #{tpu_custom_call.1} parent=1 // pred_check_branch
      %19 = sbr.rel (0) target = $region9
    $region8: #{tpu_custom_call.1} parent=1 // pred_region
      %20 = dma.done [#allocation3], 256
    $region9: #{tpu_custom_call.1} parent=1 // pred_fallthru
      _
    %v21 = vld [vmem:[#allocation2] sm:$0xff]
    %v22 = vld [vmem:[#allocation2 + $0x8] sm:$0xff]
    %v23 = vmul.f32 %v21, 1.442695
    %v24 = vpow.pop %v23
    %v25 = vmul.f32 %v22, 1.442695
    %v26 = vpow.pop %v25
    %27 = vst [vmem:[#allocation5] sm:$0xff] %v24
    %28 = vst [vmem:[#allocation5 + $0x8] sm:$0xff] %v26
    // Predicated region
    $region10: #{tpu_custom_call.1} parent=1 // pred_check
      _
    $region11: #{tpu_custom_call.1} parent=1 // pred_check_branch
      %30 = sbr.rel (0) target = $region13
    $region12: #{tpu_custom_call.1} parent=1 // pred_region
      %s32 = ssub.s32 256, 256
      %33 = vsyncadd [#allocation4], %s32
      %s35 = sshll.u32 [#allocation5], 4
      %s36 = int_to_ptr.vmem [resolvable:$true] %s35
      %38 = dma.vmem_to_hbm [thread:$0]  %s36, 256, %s1, [#allocation4]
    $region13: #{tpu_custom_call.1} parent=1 // pred_fallthru
      _
    // Predicated region
    $region14: #{tpu_custom_call.1} parent=1 // pred_check
      _
    $region15: #{tpu_custom_call.1} parent=1 // pred_check_branch
      %40 = sbr.rel (0) target = $region17
    $region16: #{tpu_custom_call.1} parent=1 // pred_region
      %41 = dma.done [#allocation4], 256
    $region17: #{tpu_custom_call.1} parent=1 // pred_fallthru
      _
    %42 = vsyncpa [#allocation3], 1
    %43 = vsyncpa [#allocation4], 1

</llo_original>
